<compile_context>
chip_gen: v5e
topology: v5e:2x2
jax: 0.10.0
libtpu: 0.0.40
codegen_flags: <defaults>
</compile_context>

<pallas_src>
import functools

import jax
import jax.numpy as jnp
from jax.experimental import pallas as pl
from jax.experimental.pallas import tpu as pltpu


def _round_up(n, m):
    return ((n + m - 1) // m) * m


def _distill_kernel(x_ref, w_ref, b_ref, logits_ref, labels_ref, loss_ref,
                    *, alpha, temperature, batch_size, precise):
    tb, c = logits_ref.shape

    # --- teacher forward: one MXU matmul per batch tile (W/b stay resident) ---
    x = x_ref[...]
    w = w_ref[...]
    if not precise:
        x = x.astype(jnp.bfloat16)          # W is already bf16 from the wrapper
    t_logits = (
        jnp.dot(x, w, preferred_element_type=jnp.float32)
        + b_ref[...].astype(jnp.float32)
    )

    s = logits_ref[...].astype(jnp.float32)      # (tb, C) student logits
    labels = labels_ref[...]                     # (tb, 1) int32

    inv_t = jnp.float32(1.0 / temperature)
    t2 = jnp.float32(temperature * temperature)

    col = jax.lax.broadcasted_iota(jnp.int32, (tb, c), 1)

    # --- student: shared row max for both softmaxes (max(z/T) == max(z)/T) ---
    m_s = jnp.max(s, axis=1, keepdims=True)
    sh_s = s - m_s
    # hard cross-entropy:  CE = logsumexp(sh_s) - sh_s[label]
    e_s = jnp.exp(sh_s)
    lse_s = jnp.log(jnp.sum(e_s, axis=1, keepdims=True))
    picked = jnp.sum(jnp.where(col == labels, sh_s, 0.0), axis=1, keepdims=True)
    base_per_row = lse_s - picked

    # temperature-scaled student log-softmax pieces (reuses the same shift)
    sh_st = sh_s * inv_t
    e_st = jnp.exp(sh_st)
    lse_st = jnp.log(jnp.sum(e_st, axis=1, keepdims=True))

    # --- teacher softmax: single exp pass ---
    m_t = jnp.max(t_logits, axis=1, keepdims=True)
    sh_t = (t_logits - m_t) * inv_t
    e_t = jnp.exp(sh_t)
    denom_t = jnp.sum(e_t, axis=1, keepdims=True)
    if precise:
        inv_denom_t = 1.0 / denom_t
    else:
        inv_denom_t = pl.reciprocal(denom_t, approx=True)   # EUP slot, ~free

    # Folded KL:  sum p_t*(log_p_t - log_p_s)
    #   = (1/denom_t) * sum e_t*(sh_t - sh_st) + lse_st - log(denom_t)
    cross = jnp.sum(e_t * (sh_t - sh_st), axis=1, keepdims=True)
    kd_per_row = (inv_denom_t * cross + lse_st - jnp.log(denom_t)) * t2

    # mask rows beyond the real batch (ragged last block reads garbage; where,
    # not multiply, so inf/NaN in garbage rows cannot leak).
    row = (pl.program_id(0) * tb
           + jax.lax.broadcasted_iota(jnp.int32, (tb, 1), 0))
    a = jnp.float32(alpha)
    per_row = a * base_per_row + (1.0 - a) * kd_per_row
    per_row = jnp.where(row < batch_size, per_row, 0.0)

    # per-tile partial sum -> lane-dense (8,128) output block (single vst,
    # no masked per-row stores); only element [0,0] is non-zero.
    partial = jnp.sum(per_row, axis=0, keepdims=True)        # (1, 1)
    sub = jax.lax.broadcasted_iota(jnp.int32, (8, 128), 0)
    lane = jax.lax.broadcasted_iota(jnp.int32, (8, 128), 1)
    loss_ref[...] = jnp.where((sub == 0) & (lane == 0), partial, 0.0)


def distillation_loss(x, teacher_w, teacher_b, outputs, labels, *,
                      alpha=0.5, temperature=2.0, block_b=256, precise=False):
    """Fused KD loss: batch-tiled Pallas kernel + tiny final reduction.

    block_b: 256-512 works well on v6e/v7x; 128 is plenty on v5e (128-wide MXU).
    precise=True keeps everything f32 / exact (bit-close to the reference);
    precise=False (default) uses bf16 MXU operands + approx reciprocal.
    """
    B, D = x.shape
    C = outputs.shape[1]

    tb = min(block_b, _round_up(B, 8))
    # v7x has 2 TensorCores: make sure the 'parallel' batch axis has >= 2 tiles
    # whenever B allows it (one extra grid step costs ~0.35us on v5e/v6e).
    if B > 8 and pl.cdiv(B, tb) < 2:
        tb = max(8, _round_up((B + 1) // 2, 8))
    num_tiles = pl.cdiv(B, tb)

    labels2d = labels.astype(jnp.int32).reshape(B, 1)
    b2d = teacher_b.reshape(1, C).astype(jnp.float32)
    w = teacher_w if precise else teacher_w.astype(jnp.bfloat16)

    kernel = functools.partial(
        _distill_kernel,
        alpha=float(alpha),
        temperature=float(temperature),
        batch_size=B,
        precise=precise,
    )

    bytes_accessed = int(
        x.size * x.dtype.itemsize
        + w.size * w.dtype.itemsize
        + b2d.size * 4
        + outputs.size * outputs.dtype.itemsize
        + labels2d.size * 4
        + num_tiles * 8 * 128 * 4
    )
    cost = pl.CostEstimate(
        flops=int(2 * B * D * C + 14 * B * C),
        transcendentals=int(3 * B * C),
        bytes_accessed=bytes_accessed,
    )

    slab = pl.pallas_call(
        kernel,
        out_shape=jax.ShapeDtypeStruct((num_tiles * 8, 128), jnp.float32),
        grid_spec=pltpu.PrefetchScalarGridSpec(
            num_scalar_prefetch=0,
            grid=(num_tiles,),
            in_specs=[
                pl.BlockSpec((tb, D), lambda i: (i, 0)),   # x tile
                pl.BlockSpec((D, C), lambda i: (0, 0)),    # teacher W (resident)
                pl.BlockSpec((1, C), lambda i: (0, 0)),    # teacher b (resident)
                pl.BlockSpec((tb, C), lambda i: (i, 0)),   # student logits tile
                pl.BlockSpec((tb, 1), lambda i: (i, 0)),   # int labels tile
            ],
            out_specs=pl.BlockSpec((8, 128), lambda i: (i, 0)),
        ),
        compiler_params=pltpu.CompilerParams(
            dimension_semantics=("parallel",),
            vmem_limit_bytes=48 * 1024 * 1024,   # stays under v7x's 64 MiB/TC
        ),
        cost_estimate=cost,
    )(x, w, b2d, outputs, labels2d)

    return jnp.sum(slab) / B


def reference_loss(x, teacher_w, teacher_b, outputs, labels,
                   *, alpha=0.5, temperature=2.0):
    """Pure-JAX reference mirroring the PyTorch module."""
    num_classes = outputs.shape[1]
    onehot = jax.nn.one_hot(labels, num_classes, dtype=jnp.float32)
    base = -jnp.mean(
        jnp.sum(onehot * jax.nn.log_softmax(outputs, axis=1), axis=1)
    )
    t_logits = x @ teacher_w + teacher_b
    log_p_s = jax.nn.log_softmax(outputs / temperature, axis=1)
    p_t = jax.nn.softmax(t_logits / temperature, axis=1)
    kd = jnp.sum(p_t * (jnp.log(p_t) - log_p_s)) / outputs.shape[0]
    kd = kd * temperature ** 2
    return alpha * base + (1.0 - alpha) * kd


if __name__ == "__main__":
    B, D, C = 8, 32, 16
    alpha, temperature = 0.5, 2.0

    key = jax.random.PRNGKey(0)
    kx, kw, kb, ko, kl = jax.random.split(key, 5)

    x = jax.random.normal(kx, (B, D), dtype=jnp.float32)
    teacher_w = jax.random.normal(kw, (D, C), dtype=jnp.float32) * 0.1
    teacher_b = jax.random.normal(kb, (1, C), dtype=jnp.float32) * 0.1
    outputs = jax.random.normal(ko, (B, C), dtype=jnp.float32)
    labels = jax.random.randint(kl, (B,), 0, C, dtype=jnp.int32)

    ref = reference_loss(x, teacher_w, teacher_b, outputs, labels,
                         alpha=alpha, temperature=temperature)

    # fast path: bf16 MXU operands + approx reciprocal (looser tolerance)
    loss_fast = distillation_loss(x, teacher_w, teacher_b, outputs, labels,
                                  alpha=alpha, temperature=temperature)
    jax.block_until_ready(loss_fast)
    assert jnp.allclose(loss_fast, ref, rtol=2e-2, atol=2e-2), (loss_fast, ref)

    # precise path: all-f32, bit-close to the reference
    loss_precise = distillation_loss(x, teacher_w, teacher_b, outputs, labels,
                                     alpha=alpha, temperature=temperature,
                                     precise=True)
    jax.block_until_ready(loss_precise)
    assert jnp.allclose(loss_precise, ref, rtol=1e-5, atol=1e-5), (
        loss_precise, ref)

    # ragged batch (no host-side padding; edge-block rows masked in-kernel)
    Bo = 5
    ref2 = reference_loss(x[:Bo], teacher_w, teacher_b, outputs[:Bo],
                          labels[:Bo], alpha=alpha, temperature=temperature)
    loss2 = distillation_loss(x[:Bo], teacher_w, teacher_b, outputs[:Bo],
                              labels[:Bo], alpha=alpha, temperature=temperature)
    jax.block_until_ready(loss2)
    assert jnp.allclose(loss2, ref2, rtol=2e-2, atol=2e-2), (loss2, ref2)

    # multi-tile grid with a ragged last tile (exercises tiling + masking)
    B3 = 40
    k2 = jax.random.PRNGKey(1)
    k2x, k2o, k2l = jax.random.split(k2, 3)
    x3 = jax.random.normal(k2x, (B3, D), dtype=jnp.float32)
    out3 = jax.random.normal(k2o, (B3, C), dtype=jnp.float32)
    lab3 = jax.random.randint(k2l, (B3,), 0, C, dtype=jnp.int32)
    ref3 = reference_loss(x3, teacher_w, teacher_b, out3, lab3,
                          alpha=alpha, temperature=temperature)
    loss3 = distillation_loss(x3, teacher_w, teacher_b, out3, lab3,
                              alpha=alpha, temperature=temperature, block_b=16)
    jax.block_until_ready(loss3)
    assert jnp.allclose(loss3, ref3, rtol=2e-2, atol=2e-2), (loss3, ref3)

    print("KERNEL_OK")
</pallas_src>

<mosaic_0001>
module attributes {stable_mosaic.version = 11 : i64} {
  func.func @_distill_kernel(%arg0: i32, %arg1: memref<8x32xf32, #tpu.memory_space<vmem>>, %arg2: memref<32x16xbf16, #tpu.memory_space<vmem>>, %arg3: memref<1x16xf32, #tpu.memory_space<vmem>>, %arg4: memref<8x16xf32, #tpu.memory_space<vmem>>, %arg5: memref<8x1xi32, #tpu.memory_space<vmem>>, %arg6: memref<8x128xf32, #tpu.memory_space<vmem>>) attributes {dimension_semantics = [#tpu.dimension_semantics<parallel>], iteration_bounds = array<i64: 1>, scalar_prefetch = 0 : i64, scratch_operands = 0 : i64, tpu.core_type = #tpu.core_type<tc>, window_params = [{transform_indices = @transform_0, window_bounds = array<i64: 8, 32>}, {pipeline_mode = #tpu.pipeline_mode<synchronous>, transform_indices = @transform_1, window_bounds = array<i64: 32, 16>}, {pipeline_mode = #tpu.pipeline_mode<synchronous>, transform_indices = @transform_2, window_bounds = array<i64: 1, 16>}, {transform_indices = @transform_3, window_bounds = array<i64: 8, 16>}, {transform_indices = @transform_4, window_bounds = array<i64: 8, 1>}, {transform_indices = @transform_5, window_bounds = array<i64: 8, 128>}]} {
    %c0 = arith.constant 0 : index
    %c0_0 = arith.constant 0 : index
    %0 = vector.load %arg1[%c0, %c0_0] : memref<8x32xf32, #tpu.memory_space<vmem>>, vector<8x32xf32>
    %c0_1 = arith.constant 0 : index
    %c0_2 = arith.constant 0 : index
    %1 = vector.load %arg2[%c0_1, %c0_2] : memref<32x16xbf16, #tpu.memory_space<vmem>>, vector<32x16xbf16>
    %2 = arith.truncf %0 : vector<8x32xf32> to vector<8x32xbf16>
    %cst = arith.constant dense<0.000000e+00> : vector<8x16xf32>
    %3 = tpu.matmul %2, %1, %cst {dimension_numbers = #tpu.dot_dimension_numbers<[1], [0], [0], [1], [0, 0, 1, 1], [], []>} : vector<8x32xbf16>, vector<32x16xbf16>, vector<8x16xf32> -> vector<8x16xf32>
    %c0_3 = arith.constant 0 : index
    %c0_4 = arith.constant 0 : index
    %4 = vector.load %arg3[%c0_3, %c0_4] : memref<1x16xf32, #tpu.memory_space<vmem>>, vector<1x16xf32>
    %5 = vector.broadcast %4 : vector<1x16xf32> to vector<8x16xf32>
    %6 = arith.addf %3, %5 : vector<8x16xf32>
    %c0_5 = arith.constant 0 : index
    %c0_6 = arith.constant 0 : index
    %7 = vector.load %arg4[%c0_5, %c0_6] : memref<8x16xf32, #tpu.memory_space<vmem>>, vector<8x16xf32>
    %c0_7 = arith.constant 0 : index
    %c0_8 = arith.constant 0 : index
    %8 = vector.load %arg5[%c0_7, %c0_8] : memref<8x1xi32, #tpu.memory_space<vmem>>, vector<8x1xi32>
    %9 = tpu.iota {dimensions = array<i32: 1>} : vector<8x16xi32>
    %cst_9 = arith.constant dense<0xFF800000> : vector<8xf32>
    %10 = vector.multi_reduction <maximumf>, %7, %cst_9 [1] : vector<8x16xf32> to vector<8xf32>
    %11 = vector.shape_cast %10 : vector<8xf32> to vector<8x1xf32>
    %12 = vector.broadcast %11 : vector<8x1xf32> to vector<8x16xf32>
    %13 = arith.subf %7, %12 : vector<8x16xf32>
    %14 = math.exp %13 : vector<8x16xf32>
    %cst_10 = arith.constant dense<0.000000e+00> : vector<8xf32>
    %15 = vector.multi_reduction <add>, %14, %cst_10 [1] : vector<8x16xf32> to vector<8xf32>
    %16 = vector.shape_cast %15 : vector<8xf32> to vector<8x1xf32>
    %17 = math.log %16 : vector<8x1xf32>
    %18 = vector.broadcast %8 : vector<8x1xi32> to vector<8x16xi32>
    %19 = arith.cmpi eq, %9, %18 : vector<8x16xi32>
    %cst_11 = arith.constant 0.000000e+00 : f32
    %20 = vector.broadcast %cst_11 : f32 to vector<8x16xf32>
    %21 = arith.select %19, %13, %20 : vector<8x16xi1>, vector<8x16xf32>
    %cst_12 = arith.constant dense<0.000000e+00> : vector<8xf32>
    %22 = vector.multi_reduction <add>, %21, %cst_12 [1] : vector<8x16xf32> to vector<8xf32>
    %23 = vector.shape_cast %22 : vector<8xf32> to vector<8x1xf32>
    %24 = arith.subf %17, %23 : vector<8x1xf32>
    %cst_13 = arith.constant 5.000000e-01 : f32
    %25 = vector.broadcast %cst_13 : f32 to vector<8x16xf32>
    %26 = arith.mulf %13, %25 : vector<8x16xf32>
    %27 = math.exp %26 : vector<8x16xf32>
    %cst_14 = arith.constant dense<0.000000e+00> : vector<8xf32>
    %28 = vector.multi_reduction <add>, %27, %cst_14 [1] : vector<8x16xf32> to vector<8xf32>
    %29 = vector.shape_cast %28 : vector<8xf32> to vector<8x1xf32>
    %30 = math.log %29 : vector<8x1xf32>
    %cst_15 = arith.constant dense<0xFF800000> : vector<8xf32>
    %31 = vector.multi_reduction <maximumf>, %6, %cst_15 [1] : vector<8x16xf32> to vector<8xf32>
    %32 = vector.shape_cast %31 : vector<8xf32> to vector<8x1xf32>
    %33 = vector.broadcast %32 : vector<8x1xf32> to vector<8x16xf32>
    %34 = arith.subf %6, %33 : vector<8x16xf32>
    %cst_16 = arith.constant 5.000000e-01 : f32
    %35 = vector.broadcast %cst_16 : f32 to vector<8x16xf32>
    %36 = arith.mulf %34, %35 : vector<8x16xf32>
    %37 = math.exp %36 : vector<8x16xf32>
    %cst_17 = arith.constant dense<0.000000e+00> : vector<8xf32>
    %38 = vector.multi_reduction <add>, %37, %cst_17 [1] : vector<8x16xf32> to vector<8xf32>
    %39 = vector.shape_cast %38 : vector<8xf32> to vector<8x1xf32>
    %40 = tpu.reciprocal %39 {approx = true} : vector<8x1xf32> -> vector<8x1xf32>
    %41 = arith.subf %36, %26 : vector<8x16xf32>
    %42 = arith.mulf %37, %41 : vector<8x16xf32>
    %cst_18 = arith.constant dense<0.000000e+00> : vector<8xf32>
    %43 = vector.multi_reduction <add>, %42, %cst_18 [1] : vector<8x16xf32> to vector<8xf32>
    %44 = vector.shape_cast %43 : vector<8xf32> to vector<8x1xf32>
    %45 = arith.mulf %40, %44 : vector<8x1xf32>
    %46 = arith.addf %45, %30 : vector<8x1xf32>
    %47 = math.log %39 : vector<8x1xf32>
    %48 = arith.subf %46, %47 : vector<8x1xf32>
    %cst_19 = arith.constant 4.000000e+00 : f32
    %49 = vector.broadcast %cst_19 : f32 to vector<8x1xf32>
    %50 = arith.mulf %48, %49 : vector<8x1xf32>
    %c8_i32 = arith.constant 8 : i32
    %51 = arith.muli %arg0, %c8_i32 : i32
    %52 = tpu.iota {dimensions = array<i32: 0>} : vector<8x1xi32>
    %53 = vector.broadcast %51 : i32 to vector<8x1xi32>
    %54 = arith.addi %53, %52 : vector<8x1xi32>
    %cst_20 = arith.constant 5.000000e-01 : f32
    %55 = vector.broadcast %cst_20 : f32 to vector<8x1xf32>
    %56 = arith.mulf %55, %24 : vector<8x1xf32>
    %cst_21 = arith.constant 1.000000e+00 : f32
    %cst_22 = arith.constant 5.000000e-01 : f32
    %57 = arith.subf %cst_21, %cst_22 : f32
    %58 = vector.broadcast %57 : f32 to vector<8x1xf32>
    %59 = arith.mulf %58, %50 : vector<8x1xf32>
    %60 = arith.addf %56, %59 : vector<8x1xf32>
    %c8_i32_23 = arith.constant 8 : i32
    %61 = vector.broadcast %c8_i32_23 : i32 to vector<8x1xi32>
    %62 = arith.cmpi slt, %54, %61 : vector<8x1xi32>
    %cst_24 = arith.constant 0.000000e+00 : f32
    %63 = vector.broadcast %cst_24 : f32 to vector<8x1xf32>
    %64 = arith.select %62, %60, %63 : vector<8x1xi1>, vector<8x1xf32>
    %cst_25 = arith.constant dense<0.000000e+00> : vector<1xf32>
    %65 = vector.multi_reduction <add>, %64, %cst_25 [0] : vector<8x1xf32> to vector<1xf32>
    %66 = vector.shape_cast %65 : vector<1xf32> to vector<1x1xf32>
    %67 = tpu.iota {dimensions = array<i32: 0>} : vector<8x128xi32>
    %68 = tpu.iota {dimensions = array<i32: 1>} : vector<8x128xi32>
    %c0_i32 = arith.constant 0 : i32
    %69 = vector.broadcast %c0_i32 : i32 to vector<8x128xi32>
    %70 = arith.cmpi eq, %67, %69 : vector<8x128xi32>
    %c0_i32_26 = arith.constant 0 : i32
    %71 = vector.broadcast %c0_i32_26 : i32 to vector<8x128xi32>
    %72 = arith.cmpi eq, %68, %71 : vector<8x128xi32>
    %73 = arith.andi %70, %72 : vector<8x128xi1>
    %cst_27 = arith.constant 0.000000e+00 : f32
    %74 = vector.shape_cast %66 : vector<1x1xf32> to vector<1x1xf32>
    %75 = vector.broadcast %74 : vector<1x1xf32> to vector<8x128xf32>
    %76 = vector.broadcast %cst_27 : f32 to vector<8x128xf32>
    %77 = arith.select %73, %75, %76 : vector<8x128xi1>, vector<8x128xf32>
    %c0_28 = arith.constant 0 : index
    %c0_29 = arith.constant 0 : index
    %78 = vector.load %arg6[%c0_28, %c0_29] : memref<8x128xf32, #tpu.memory_space<vmem>>, vector<8x128xf32>
    tpu.vector_store %arg6[%c0_28, %c0_29], %77 {strides = array<i32>} : memref<8x128xf32, #tpu.memory_space<vmem>>, vector<8x128xf32>,
    return
  }
  func.func @transform_0(%arg0: i32) -> (i32, i32) {
    %c0_i32 = arith.constant 0 : i32
    %c0_i32_0 = arith.constant 0 : i32
    return %arg0, %c0_i32 : i32, i32
  }
  func.func @transform_1(%arg0: i32) -> (i32, i32) {
    %c0_i32 = arith.constant 0 : i32
    %c0_i32_0 = arith.constant 0 : i32
    %c0_i32_1 = arith.constant 0 : i32
    return %c0_i32, %c0_i32_0 : i32, i32
  }
  func.func @transform_2(%arg0: i32) -> (i32, i32) {
    %c0_i32 = arith.constant 0 : i32
    %c0_i32_0 = arith.constant 0 : i32
    %c0_i32_1 = arith.constant 0 : i32
    return %c0_i32, %c0_i32_0 : i32, i32
  }
  func.func @transform_3(%arg0: i32) -> (i32, i32) {
    %c0_i32 = arith.constant 0 : i32
    %c0_i32_0 = arith.constant 0 : i32
    return %arg0, %c0_i32 : i32, i32
  }
  func.func @transform_4(%arg0: i32) -> (i32, i32) {
    %c0_i32 = arith.constant 0 : i32
    %c0_i32_0 = arith.constant 0 : i32
    return %arg0, %c0_i32 : i32, i32
  }
  func.func @transform_5(%arg0: i32) -> (i32, i32) {
    %c0_i32 = arith.constant 0 : i32
    %c0_i32_0 = arith.constant 0 : i32
    return %arg0, %c0_i32 : i32, i32
  }
}

</mosaic_0001>

<llo_original>
// kernel: tpu_custom_call.1
$region0: #{tpu_custom_call.1}
  #allocation0 [shape = 'u32[]', space=smem, size = 0x4, offset = 0x4, fixed_abs, tag = 'smem constant byte address 0x4 - core index']
  #allocation1 [shape = 'u32[72,128]{1,0:T(1,128)}', space=vmem, size = 0x9000, scoped, tag = 'internal scratch']
  %s0 = inlined_call_operand.vmem [shape: f32[8,32], index: 0, kind: input, shape index: {}]
  %s1 = inlined_call_operand.vmem [shape: bf16[32,16], index: 1, kind: input, shape index: {}]
  %s2 = inlined_call_operand.vmem [shape: f32[1,16], index: 2, kind: input, shape index: {}]
  %s3 = inlined_call_operand.vmem [shape: f32[8,16], index: 3, kind: input, shape index: {}]
  %s4 = inlined_call_operand.vmem [shape: s32[8,1], index: 4, kind: input, shape index: {}]
  %s5 = inlined_call_operand.hbm [shape: f32[8,128], index: 5, kind: output, shape index: {}]
  %s6 = sld [smem:[#allocation0]]
  $region30: #{tpu_custom_call.1} parent=0
    _
  %s8 = ssub.s32 1, %s6
  %s9 = scalar_select 0, %s8, %s6
  $region1: #{tpu_custom_call.1} parent=0
    #allocation2 [shape = 'u8[4096]{0}', space=vmem, size = 0x1000, scoped, tag = 'output window, operand 0, single buffered']
    #allocation3 [shape = 's32[1]{0}', space=sflag, size = 0x4, scoped, tag = 'scoped memory for tpu_custom_call.1']
    %10 = vsyncpa [#allocation3], 0
    // Predicated region
    $region2: #{tpu_custom_call.1} parent=1 // pred_check
      _
    $region3: #{tpu_custom_call.1} parent=1 // pred_check_branch
      %12 = sbr.rel (0) target = $region5
    $region4: #{tpu_custom_call.1} parent=1 // pred_region
      _
    $region5: #{tpu_custom_call.1} parent=1 // pred_fallthru
      _
    // Predicated region
    $region6: #{tpu_custom_call.1} parent=1 // pred_check
      _
    $region7: #{tpu_custom_call.1} parent=1 // pred_check_branch
      %14 = sbr.rel (0) target = $region9
    $region8: #{tpu_custom_call.1} parent=1 // pred_region
      _
    $region9: #{tpu_custom_call.1} parent=1 // pred_fallthru
      _
    // Predicated region
    $region10: #{tpu_custom_call.1} parent=1 // pred_check
      _
    $region11: #{tpu_custom_call.1} parent=1 // pred_check_branch
      %16 = sbr.rel (0) target = $region13
    $region12: #{tpu_custom_call.1} parent=1 // pred_region
      _
    $region13: #{tpu_custom_call.1} parent=1 // pred_fallthru
      _
    // Predicated region
    $region14: #{tpu_custom_call.1} parent=1 // pred_check
      _
    $region15: #{tpu_custom_call.1} parent=1 // pred_check_branch
      %18 = sbr.rel (0) target = $region17
    $region16: #{tpu_custom_call.1} parent=1 // pred_region
      _
    $region17: #{tpu_custom_call.1} parent=1 // pred_fallthru
      _
    // Predicated region
    $region18: #{tpu_custom_call.1} parent=1 // pred_check
      _
    $region19: #{tpu_custom_call.1} parent=1 // pred_check_branch
      %20 = sbr.rel (0) target = $region21
    $region20: #{tpu_custom_call.1} parent=1 // pred_region
      _
    $region21: #{tpu_custom_call.1} parent=1 // pred_fallthru
      _
    %v22 = vld [vmem:[%s0] sm:$0xff]
    %v23 = vld [vmem:[%s1] sm:$0xf]
    %v24 = vld [vmem:[%s1 + $0x4] sm:$0xf]
    %v25 = vld [vmem:[%s1 + $0x8] sm:$0xf]
    %v26 = vld [vmem:[%s1 + $0xc] sm:$0xf]
    %v27 = vpack.c.bf16 %v22, %v22
    %v28 = vld [vmem:[%s2] sm:$0x1]
    %v30 = vperm.slane %v28, 0
    %v36 = vunpack.c.l.b16 %v23
    %v37 = vunpack.c.l.b16 %v24
    %v38 = vunpack.c.l.b16 %v25
    %v39 = vunpack.c.l.b16 %v26
    %v40 = vpack.c.b16 %v37, %v36
    %v41 = vpack.c.b16 %v39, %v38
    %vm44 = vcmask 261120
    %v46 = vsel %vm44, %v27, 0
    %48 = vmatpush.bf16.msra.mxu0 0
    %49 = vmatpush.bf16.msra.mxu0 0
    %50 = vmatpush.bf16.msra.mxu0 0
    %51 = vmatpush.bf16.msra.mxu0 0
    %52 = vmatpush.bf16.msra.mxu0 0
    %53 = vmatpush.bf16.msra.mxu0 0
    %54 = vmatpush.bf16.msra.mxu0 %v41
    %55 = vmatpush.bf16.msra.mxu0 %v40
    %56 = vmatmul.bf16.gmra.mxu0 %v46
    %v57 = vpop.f32.mrf.mxu0
    %v58 = vadd.f32 %v30, %v57
    %v59 = vpop.f32.mrf.mxu0
    %60 = vdwg.mxu0
    %v61 = vld [vmem:[%s3] sm:$0xff]
    %v62 = vld [vmem:[%s4] sm:$0xff]
    %v63 = vlaneseq
    %v64 = vand.u32 %v63, 127
    %vm65 = vcmask 130048
    %v66 = vsel %vm65, %v61, -inf
    %67 = vmax.xlane.f32.xlu0 %v66
    %v68 = vpop.xlane.xlu0 %67
    %v69 = vsub.f32 %v61, %v68
    %v70 = vmul.f32 %v69, 1.442695
    %v71 = vpow.pop %v70
    %v72 = vsel %vm65, %v71, 0.0
    %73 = vadd.xlane.f32.xlu0 %v72
    %v74 = vpop.xlane.xlu0 %73
    %v75 = vlog2.pop %v74
    %v76 = vmul.f32 %v75, 0.6931472
    %77 = vset.pattern.permute.xlu0 0
    %78 = vperm.xlu0 %77, %v62
    %v79 = vpop.permute.xlu0 %78
    %vm80 = vcmp.eq.s32.totalorder %v64, %v79
    %v81 = vsel %vm80, %v69, 0.0
    %v82 = vsel %vm65, %v81, 0.0
    %83 = vadd.xlane.f32.xlu0 %v82
    %v84 = vpop.xlane.xlu0 %83
    %v85 = vsub.f32 %v76, %v84
    %v86 = vmul.f32 %v69, 0.5
    %v87 = vmul.f32 %v86, 1.442695
    %v88 = vpow.pop %v87
    %v89 = vsel %vm65, %v88, 0.0
    %90 = vadd.xlane.f32.xlu0 %v89
    %v91 = vpop.xlane.xlu0 %90
    %v92 = vlog2.pop %v91
    %v93 = vmul.f32 %v92, 0.6931472
    %v94 = vsel %vm65, %v58, -inf
    %95 = vmax.xlane.f32.xlu0 %v94
    %v96 = vpop.xlane.xlu0 %95
    %v97 = vsub.f32 %v58, %v96
    %v98 = vmul.f32 %v97, 0.5
    %v99 = vmul.f32 %v98, 1.442695
    %v100 = vpow.pop %v99
    %v101 = vsel %vm65, %v100, 0.0
    %102 = vadd.xlane.f32.xlu0 %v101
    %v103 = vpop.xlane.xlu0 %102
    %v104 = vrcp.pop %v103
    %v105 = vsub.f32 %v98, %v86
    %v106 = vmul.f32 %v100, %v105
    %v107 = vsel %vm65, %v106, 0.0
    %108 = vadd.xlane.f32.xlu0 %v107
    %v109 = vpop.xlane.xlu0 %108
    %v110 = vmul.f32 %v104, %v109
    %v111 = vadd.f32 %v110, %v93
    %v112 = vlog2.pop %v103
    %v113 = vmul.f32 %v112, 0.6931472
    %v114 = vsub.f32 %v111, %v113
    %v115 = vmul.f32 %v114, 4.0
    %s116 = smul.u32 0, 8
    %v117 = vlaneseq
    %v118 = vshrl.u32 %v117, 7
    %v119 = vstv %s116
    %v120 = vadd.s32 %v119, %v118
    %v121 = vmul.f32 %v85, 0.5
    %v122 = vmul.f32 %v115, 0.5
    %v123 = vadd.f32 %v121, %v122
    %vm124 = vcmp.lt.s32.totalorder %v120, 8
    %v125 = vsel %vm124, %v123, 0.0
    %v126 = vrot.slane %v125, 4
    %v127 = vadd.f32 %v125, %v126
    %v128 = vrot.slane %v127, 2
    %v129 = vadd.f32 %v127, %v128
    %v130 = vrot.slane %v129, 1
    %v131 = vadd.f32 %v129, %v130
    %vm132 = vcmp.eq.s32.totalorder %v118, 0
    %vm133 = vcmp.eq.s32.totalorder %v64, 0
    %vm134 = vmand %vm132, %vm133
    %v135 = vsel %vm134, %v131, 0.0
    %136 = vst [vmem:[#allocation2] sm:$0xff] %v135
    // Predicated region
    $region22: #{tpu_custom_call.1} parent=1 // pred_check
      _
    $region23: #{tpu_custom_call.1} parent=1 // pred_check_branch
      %138 = sbr.rel (0) target = $region25
    $region24: #{tpu_custom_call.1} parent=1 // pred_region
      %140 = vsyncadd [#allocation3], 0
      %s142 = sshll.u32 [#allocation2], 4
      %s143 = int_to_ptr.vmem [resolvable:$true] %s142
      %s144 = sshll.u32 %s5, 4
      %s145 = int_to_ptr.hbm [resolvable:$true] %s144
      %147 = dma.vmem_to_hbm [thread:$0]  %s143, 128, %s145, [#allocation3]
    $region25: #{tpu_custom_call.1} parent=1 // pred_fallthru
      _
    // Predicated region
    $region26: #{tpu_custom_call.1} parent=1 // pred_check
      _
    $region27: #{tpu_custom_call.1} parent=1 // pred_check_branch
      %149 = sbr.rel (0) target = $region29
    $region28: #{tpu_custom_call.1} parent=1 // pred_region
      %151 = dma.done [#allocation3], 128
    $region29: #{tpu_custom_call.1} parent=1 // pred_fallthru
      _
    %152 = vsyncpa [#allocation3], 1

</llo_original>
